<compile_context>
chip_gen: v7x
topology: tpu7x:2x2x1
jax: 0.10.0
libtpu: 0.0.40
codegen_flags: <defaults>
</compile_context>

<pallas_src>
import math

import jax
import jax.numpy as jnp
from jax.experimental import pallas as pl
from jax.experimental.pallas import tpu as pltpu


def _softplus(x):
    # numerically stable softplus using only elementwise ops (VPU + EUP friendly)
    return jnp.maximum(x, 0.0) + jnp.log(1.0 + jnp.exp(-jnp.abs(x)))


def decision_kernel(x_ref, u_ref,
                    w1_ref, b1_ref, w2_ref, b2_ref,
                    wg1_ref, bg1_ref, wg2_ref, bg2_ref,
                    wac1_ref, bac1_ref, wac2_ref, bac2_ref,
                    out_ref):
    # One batch element per grid step: x is (P, F).
    x = x_ref[...]

    # --- feature_extractor: Linear -> ReLU -> Linear -> ReLU ---
    h = jnp.maximum(
        jnp.dot(x, w1_ref[...], preferred_element_type=jnp.float32) + b1_ref[...], 0.0)
    feats = jnp.maximum(
        jnp.dot(h, w2_ref[...], preferred_element_type=jnp.float32) + b2_ref[...], 0.0)   # (P, H)

    # --- global context: mean over patches -> Linear -> ReLU -> Linear ---
    g = jnp.mean(feats, axis=0, keepdims=True)                                            # (1, H)
    gh = jnp.maximum(
        jnp.dot(g, wg1_ref[...], preferred_element_type=jnp.float32) + bg1_ref[...], 0.0)
    gc = jnp.dot(gh, wg2_ref[...], preferred_element_type=jnp.float32) + bg2_ref[...]     # (1, H)
    feats = feats + gc                                                                    # broadcast add

    # --- fused actor + critic heads ---
    # hidden: [actor_hidden | critic_hidden]  -> (P, 2H)
    h_ac = jnp.maximum(
        jnp.dot(feats, wac1_ref[...], preferred_element_type=jnp.float32) + bac1_ref[...], 0.0)
    # block-diagonal second layer -> (P, 8): col0,1 = actor logits, col2 = value
    head = jnp.dot(h_ac, wac2_ref[...], preferred_element_type=jnp.float32) + bac2_ref[...]

    l0 = head[:, 0:1]
    l1 = head[:, 1:2]
    val = head[:, 2:3]

    # --- 2-class softmax in logistic form (pure elementwise, no cross-lane reduce) ---
    d = l1 - l0
    logp1 = -_softplus(-d)
    logp0 = -_softplus(d)
    p1 = jnp.exp(logp1)                       # == sigmoid(d)
    p0 = 1.0 - p1

    # --- Categorical sample via inverse CDF with externally supplied uniforms ---
    u = u_ref[...]                                                      # (P, 1) in [0, 1)
    action = (u < p1).astype(jnp.float32)                               # 1.0 == mask
    logp_sel = jnp.where(action > 0.5, logp1, logp0)
    ent = -(p0 * logp0 + p1 * logp1)

    # --- single lane-packed output store ---
    zeros = jnp.zeros_like(val)
    out_ref[...] = jnp.concatenate(
        [p0, p1, action, logp_sel, ent, val, zeros, zeros], axis=-1)    # (P, 8)


def _adjust_mask_ratio(decisions, mask_probs, min_ratio, max_ratio):
    """Plain-JAX glue reproducing the data-dependent rebalancing branch."""
    B, P = decisions.shape
    flat_dec = decisions.reshape(-1)
    flat_p1 = mask_probs.reshape(-1)
    curr_ratio = flat_dec.astype(jnp.float32).mean()
    current_count = flat_dec.sum()

    # under-masked: flip unmasked patches with highest mask-prob to masked
    min_target = int(min_ratio * P * B)
    key_u = jnp.where(flat_dec == 0, flat_p1, -jnp.inf)
    rank_u = jnp.argsort(jnp.argsort(-key_u))           # rank by descending p1 among unmasked
    to_mask = jnp.minimum(min_target - current_count, jnp.sum(flat_dec == 0))
    dec_under = jnp.where((flat_dec == 0) & (rank_u < to_mask), 1, flat_dec)

    # over-masked: flip masked patches with lowest mask-prob to unmasked
    max_target = int(max_ratio * P * B)
    key_o = jnp.where(flat_dec == 1, flat_p1, jnp.inf)
    rank_o = jnp.argsort(jnp.argsort(key_o))            # rank by ascending p1 among masked
    to_unmask = jnp.minimum(current_count - max_target, jnp.sum(flat_dec == 1))
    dec_over = jnp.where((flat_dec == 1) & (rank_o < to_unmask), 0, flat_dec)

    out = jnp.where(curr_ratio < min_ratio, dec_under,
                    jnp.where(curr_ratio > max_ratio, dec_over, flat_dec))
    return out.reshape(B, P)


def decision_forward(params, patch_features, rng_key,
                     min_mask_ratio=0.4, max_mask_ratio=0.9):
    B, P, F = patch_features.shape
    H = params["w2"].shape[1]

    # uniform randoms for Categorical sampling, one per (batch, patch)
    u = jax.random.uniform(rng_key, (B, P, 1), dtype=jnp.float32)

    # fused actor/critic weights
    wac1 = jnp.concatenate([params["wa1"], params["wc1"]], axis=1)      # (H, 2H)
    bac1 = jnp.concatenate([params["ba1"], params["bc1"]], axis=1)      # (1, 2H)
    wa2p = jnp.pad(params["wa2"], ((0, 0), (0, 6)))                     # (H, 8) cols 0,1 = logits
    wc2p = jnp.pad(params["wc2"], ((0, 0), (2, 5)))                     # (H, 8) col 2 = value
    wac2 = jnp.concatenate([wa2p, wc2p], axis=0)                        # (2H, 8) block-diagonal
    bac2 = (jnp.pad(params["ba2"], ((0, 0), (0, 6)))
            + jnp.pad(params["bc2"], ((0, 0), (2, 5))))                 # (1, 8)

    def w_spec(arr):
        shape = arr.shape
        return pl.BlockSpec(shape, lambda b, _s=shape: (0,) * len(_s))  # resident across grid

    in_specs = [
        pl.BlockSpec((None, P, F), lambda b: (b, 0, 0)),                # patch features (per batch)
        pl.BlockSpec((None, P, 1), lambda b: (b, 0, 0)),                # uniforms (per batch)
        w_spec(params["w1"]), w_spec(params["b1"]),
        w_spec(params["w2"]), w_spec(params["b2"]),
        w_spec(params["wg1"]), w_spec(params["bg1"]),
        w_spec(params["wg2"]), w_spec(params["bg2"]),
        w_spec(wac1), w_spec(bac1),
        w_spec(wac2), w_spec(bac2),
    ]

    out = pl.pallas_call(
        decision_kernel,
        grid=(B,),
        in_specs=in_specs,
        out_specs=pl.BlockSpec((None, P, 8), lambda b: (b, 0, 0)),
        out_shape=jax.ShapeDtypeStruct((B, P, 8), jnp.float32),
        compiler_params=pltpu.CompilerParams(dimension_semantics=("parallel",)),
    )(patch_features, u,
      params["w1"], params["b1"], params["w2"], params["b2"],
      params["wg1"], params["bg1"], params["wg2"], params["bg2"],
      wac1, bac1, wac2, bac2)

    p1 = out[..., 1]                                  # (B, P) per-patch mask probability
    actions = out[..., 2].astype(jnp.int32)           # (B, P)
    log_probs = out[..., 3]                           # (B, P)
    entropy = out[..., 4].mean()
    values = out[..., 5]                              # (B, P)

    # TODO(synk): PyTorch's RL bookkeeping lists (saved_actions/rewards/old_probs/...)
    # are host-side training-state side effects, intentionally not part of the kernel.
    mask_decisions = _adjust_mask_ratio(actions, p1, min_mask_ratio, max_mask_ratio)
    return mask_decisions, log_probs, entropy, values


decision_forward_jit = jax.jit(
    decision_forward, static_argnames=("min_mask_ratio", "max_mask_ratio"))


def init_params(key, feature_dim, hidden_dim):
    """Deterministic synthetic init mirroring nn.Linear's U(-1/sqrt(fan_in), ...)."""
    def lin(k, fan_in, fan_out):
        bound = 1.0 / math.sqrt(fan_in)
        kw, kb = jax.random.split(k)
        w = jax.random.uniform(kw, (fan_in, fan_out), jnp.float32, -bound, bound)
        b = jax.random.uniform(kb, (1, fan_out), jnp.float32, -bound, bound)
        return w, b

    ks = jax.random.split(key, 8)
    p = {}
    p["w1"], p["b1"] = lin(ks[0], feature_dim, hidden_dim)   # feature_extractor[0]
    p["w2"], p["b2"] = lin(ks[1], hidden_dim, hidden_dim)    # feature_extractor[2]
    p["wg1"], p["bg1"] = lin(ks[2], hidden_dim, hidden_dim)  # global_context[0]
    p["wg2"], p["bg2"] = lin(ks[3], hidden_dim, hidden_dim)  # global_context[2]
    p["wa1"], p["ba1"] = lin(ks[4], hidden_dim, hidden_dim)  # actor[0]
    p["wa2"], p["ba2"] = lin(ks[5], hidden_dim, 2)           # actor[2]
    p["wc1"], p["bc1"] = lin(ks[6], hidden_dim, hidden_dim)  # critic[0]
    p["wc2"], p["bc2"] = lin(ks[7], hidden_dim, 1)           # critic[2]
    return p


if __name__ == "__main__":
    B, P, F, H = 2, 8, 64, 32   # small shapes: batch=2, num_patches=8, feature_dim=64, hidden=32
    key = jax.random.PRNGKey(0)
    kp, kx, ku = jax.random.split(key, 3)

    params = init_params(kp, F, H)
    patch_features = jax.random.normal(kx, (B, P, F), dtype=jnp.float32)

    mask_decisions, log_probs, entropy, values = decision_forward_jit(
        params, patch_features, ku, min_mask_ratio=0.4, max_mask_ratio=0.9)
    jax.block_until_ready((mask_decisions, log_probs, entropy, values))

    assert mask_decisions.shape == (B, P)
    assert log_probs.shape == (B, P)
    assert values.shape == (B, P)
    assert entropy.shape == ()
    assert bool(jnp.all((mask_decisions == 0) | (mask_decisions == 1)))
    assert bool(jnp.all(log_probs <= 0.0))
    assert bool(jnp.isfinite(entropy))
    print("KERNEL_OK")
</pallas_src>

<mosaic_0001>
module attributes {stable_mosaic.version = 11 : i64} {
  func.func @decision_kernel(%arg0: i32, %arg1: memref<1x8x64xf32, #tpu.memory_space<vmem>>, %arg2: memref<1x8x1xf32, #tpu.memory_space<vmem>>, %arg3: memref<64x32xf32, #tpu.memory_space<vmem>>, %arg4: memref<1x32xf32, #tpu.memory_space<vmem>>, %arg5: memref<32x32xf32, #tpu.memory_space<vmem>>, %arg6: memref<1x32xf32, #tpu.memory_space<vmem>>, %arg7: memref<32x32xf32, #tpu.memory_space<vmem>>, %arg8: memref<1x32xf32, #tpu.memory_space<vmem>>, %arg9: memref<32x32xf32, #tpu.memory_space<vmem>>, %arg10: memref<1x32xf32, #tpu.memory_space<vmem>>, %arg11: memref<32x64xf32, #tpu.memory_space<vmem>>, %arg12: memref<1x64xf32, #tpu.memory_space<vmem>>, %arg13: memref<64x8xf32, #tpu.memory_space<vmem>>, %arg14: memref<1x8xf32, #tpu.memory_space<vmem>>, %arg15: memref<1x8x8xf32, #tpu.memory_space<vmem>>) attributes {dimension_semantics = [#tpu.dimension_semantics<parallel>], iteration_bounds = array<i64: 2>, scalar_prefetch = 0 : i64, scratch_operands = 0 : i64, tpu.core_type = #tpu.core_type<tc>, window_params = [{transform_indices = @transform_0, window_bounds = array<i64: 1, 8, 64>}, {transform_indices = @transform_1, window_bounds = array<i64: 1, 8, 1>}, {pipeline_mode = #tpu.pipeline_mode<synchronous>, transform_indices = @transform_2, window_bounds = array<i64: 64, 32>}, {pipeline_mode = #tpu.pipeline_mode<synchronous>, transform_indices = @transform_3, window_bounds = array<i64: 1, 32>}, {pipeline_mode = #tpu.pipeline_mode<synchronous>, transform_indices = @transform_4, window_bounds = array<i64: 32, 32>}, {pipeline_mode = #tpu.pipeline_mode<synchronous>, transform_indices = @transform_5, window_bounds = array<i64: 1, 32>}, {pipeline_mode = #tpu.pipeline_mode<synchronous>, transform_indices = @transform_6, window_bounds = array<i64: 32, 32>}, {pipeline_mode = #tpu.pipeline_mode<synchronous>, transform_indices = @transform_7, window_bounds = array<i64: 1, 32>}, {pipeline_mode = #tpu.pipeline_mode<synchronous>, transform_indices = @transform_8, window_bounds = array<i64: 32, 32>}, {pipeline_mode = #tpu.pipeline_mode<synchronous>, transform_indices = @transform_9, window_bounds = array<i64: 1, 32>}, {pipeline_mode = #tpu.pipeline_mode<synchronous>, transform_indices = @transform_10, window_bounds = array<i64: 32, 64>}, {pipeline_mode = #tpu.pipeline_mode<synchronous>, transform_indices = @transform_11, window_bounds = array<i64: 1, 64>}, {pipeline_mode = #tpu.pipeline_mode<synchronous>, transform_indices = @transform_12, window_bounds = array<i64: 64, 8>}, {pipeline_mode = #tpu.pipeline_mode<synchronous>, transform_indices = @transform_13, window_bounds = array<i64: 1, 8>}, {transform_indices = @transform_14, window_bounds = array<i64: 1, 8, 8>}]} {
    %c0 = arith.constant 0 : index
    %c0_0 = arith.constant 0 : index
    %c0_1 = arith.constant 0 : index
    %0 = vector.load %arg1[%c0, %c0_0, %c0_1] : memref<1x8x64xf32, #tpu.memory_space<vmem>>, vector<1x8x64xf32>
    %1 = vector.shape_cast %0 : vector<1x8x64xf32> to vector<8x64xf32>
    %c0_2 = arith.constant 0 : index
    %c0_3 = arith.constant 0 : index
    %2 = vector.load %arg3[%c0_2, %c0_3] : memref<64x32xf32, #tpu.memory_space<vmem>>, vector<64x32xf32>
    %cst = arith.constant dense<0.000000e+00> : vector<8x32xf32>
    %3 = tpu.matmul %1, %2, %cst {dimension_numbers = #tpu.dot_dimension_numbers<[1], [0], [0], [1], [0, 0, 1, 1], [], []>} : vector<8x64xf32>, vector<64x32xf32>, vector<8x32xf32> -> vector<8x32xf32>
    %c0_4 = arith.constant 0 : index
    %c0_5 = arith.constant 0 : index
    %4 = vector.load %arg4[%c0_4, %c0_5] : memref<1x32xf32, #tpu.memory_space<vmem>>, vector<1x32xf32>
    %5 = vector.broadcast %4 : vector<1x32xf32> to vector<8x32xf32>
    %6 = arith.addf %3, %5 : vector<8x32xf32>
    %cst_6 = arith.constant 0.000000e+00 : f32
    %7 = vector.broadcast %cst_6 : f32 to vector<8x32xf32>
    %8 = arith.maximumf %6, %7 : vector<8x32xf32>
    %c0_7 = arith.constant 0 : index
    %c0_8 = arith.constant 0 : index
    %9 = vector.load %arg5[%c0_7, %c0_8] : memref<32x32xf32, #tpu.memory_space<vmem>>, vector<32x32xf32>
    %cst_9 = arith.constant dense<0.000000e+00> : vector<8x32xf32>
    %10 = tpu.matmul %8, %9, %cst_9 {dimension_numbers = #tpu.dot_dimension_numbers<[1], [0], [0], [1], [0, 0, 1, 1], [], []>} : vector<8x32xf32>, vector<32x32xf32>, vector<8x32xf32> -> vector<8x32xf32>
    %c0_10 = arith.constant 0 : index
    %c0_11 = arith.constant 0 : index
    %11 = vector.load %arg6[%c0_10, %c0_11] : memref<1x32xf32, #tpu.memory_space<vmem>>, vector<1x32xf32>
    %12 = vector.broadcast %11 : vector<1x32xf32> to vector<8x32xf32>
    %13 = arith.addf %10, %12 : vector<8x32xf32>
    %cst_12 = arith.constant 0.000000e+00 : f32
    %14 = vector.broadcast %cst_12 : f32 to vector<8x32xf32>
    %15 = arith.maximumf %13, %14 : vector<8x32xf32>
    %cst_13 = arith.constant dense<0.000000e+00> : vector<32xf32>
    %16 = vector.multi_reduction <add>, %15, %cst_13 [0] : vector<8x32xf32> to vector<32xf32>
    %17 = vector.shape_cast %16 : vector<32xf32> to vector<1x32xf32>
    %cst_14 = arith.constant 8.000000e+00 : f32
    %18 = vector.broadcast %cst_14 : f32 to vector<1x32xf32>
    %19 = arith.divf %17, %18 : vector<1x32xf32>
    %c0_15 = arith.constant 0 : index
    %c0_16 = arith.constant 0 : index
    %20 = vector.load %arg7[%c0_15, %c0_16] : memref<32x32xf32, #tpu.memory_space<vmem>>, vector<32x32xf32>
    %cst_17 = arith.constant dense<0.000000e+00> : vector<1x32xf32>
    %21 = tpu.matmul %19, %20, %cst_17 {dimension_numbers = #tpu.dot_dimension_numbers<[1], [0], [0], [1], [0, 0, 1, 1], [], []>} : vector<1x32xf32>, vector<32x32xf32>, vector<1x32xf32> -> vector<1x32xf32>
    %c0_18 = arith.constant 0 : index
    %c0_19 = arith.constant 0 : index
    %22 = vector.load %arg8[%c0_18, %c0_19] : memref<1x32xf32, #tpu.memory_space<vmem>>, vector<1x32xf32>
    %23 = arith.addf %21, %22 : vector<1x32xf32>
    %cst_20 = arith.constant 0.000000e+00 : f32
    %24 = vector.broadcast %cst_20 : f32 to vector<1x32xf32>
    %25 = arith.maximumf %23, %24 : vector<1x32xf32>
    %c0_21 = arith.constant 0 : index
    %c0_22 = arith.constant 0 : index
    %26 = vector.load %arg9[%c0_21, %c0_22] : memref<32x32xf32, #tpu.memory_space<vmem>>, vector<32x32xf32>
    %cst_23 = arith.constant dense<0.000000e+00> : vector<1x32xf32>
    %27 = tpu.matmul %25, %26, %cst_23 {dimension_numbers = #tpu.dot_dimension_numbers<[1], [0], [0], [1], [0, 0, 1, 1], [], []>} : vector<1x32xf32>, vector<32x32xf32>, vector<1x32xf32> -> vector<1x32xf32>
    %c0_24 = arith.constant 0 : index
    %c0_25 = arith.constant 0 : index
    %28 = vector.load %arg10[%c0_24, %c0_25] : memref<1x32xf32, #tpu.memory_space<vmem>>, vector<1x32xf32>
    %29 = arith.addf %27, %28 : vector<1x32xf32>
    %30 = vector.broadcast %29 : vector<1x32xf32> to vector<8x32xf32>
    %31 = arith.addf %15, %30 : vector<8x32xf32>
    %c0_26 = arith.constant 0 : index
    %c0_27 = arith.constant 0 : index
    %32 = vector.load %arg11[%c0_26, %c0_27] : memref<32x64xf32, #tpu.memory_space<vmem>>, vector<32x64xf32>
    %cst_28 = arith.constant dense<0.000000e+00> : vector<8x64xf32>
    %33 = tpu.matmul %31, %32, %cst_28 {dimension_numbers = #tpu.dot_dimension_numbers<[1], [0], [0], [1], [0, 0, 1, 1], [], []>} : vector<8x32xf32>, vector<32x64xf32>, vector<8x64xf32> -> vector<8x64xf32>
    %c0_29 = arith.constant 0 : index
    %c0_30 = arith.constant 0 : index
    %34 = vector.load %arg12[%c0_29, %c0_30] : memref<1x64xf32, #tpu.memory_space<vmem>>, vector<1x64xf32>
    %35 = vector.broadcast %34 : vector<1x64xf32> to vector<8x64xf32>
    %36 = arith.addf %33, %35 : vector<8x64xf32>
    %cst_31 = arith.constant 0.000000e+00 : f32
    %37 = vector.broadcast %cst_31 : f32 to vector<8x64xf32>
    %38 = arith.maximumf %36, %37 : vector<8x64xf32>
    %c0_32 = arith.constant 0 : index
    %c0_33 = arith.constant 0 : index
    %39 = vector.load %arg13[%c0_32, %c0_33] : memref<64x8xf32, #tpu.memory_space<vmem>>, vector<64x8xf32>
    %cst_34 = arith.constant dense<0.000000e+00> : vector<8x8xf32>
    %40 = tpu.matmul %38, %39, %cst_34 {dimension_numbers = #tpu.dot_dimension_numbers<[1], [0], [0], [1], [0, 0, 1, 1], [], []>} : vector<8x64xf32>, vector<64x8xf32>, vector<8x8xf32> -> vector<8x8xf32>
    %c0_35 = arith.constant 0 : index
    %c0_36 = arith.constant 0 : index
    %41 = vector.load %arg14[%c0_35, %c0_36] : memref<1x8xf32, #tpu.memory_space<vmem>>, vector<1x8xf32>
    %42 = vector.broadcast %41 : vector<1x8xf32> to vector<8x8xf32>
    %43 = arith.addf %40, %42 : vector<8x8xf32>
    %44 = vector.extract_strided_slice %43 {offsets = [0, 0], sizes = [8, 1], strides = [1, 1]} : vector<8x8xf32> to vector<8x1xf32>
    %45 = vector.extract_strided_slice %43 {offsets = [0, 1], sizes = [8, 1], strides = [1, 1]} : vector<8x8xf32> to vector<8x1xf32>
    %46 = vector.extract_strided_slice %43 {offsets = [0, 2], sizes = [8, 1], strides = [1, 1]} : vector<8x8xf32> to vector<8x1xf32>
    %47 = arith.subf %45, %44 : vector<8x1xf32>
    %cst_37 = arith.constant 0.000000e+00 : f32
    %48 = vector.broadcast %cst_37 : f32 to vector<8x1xf32>
    %49 = arith.subf %48, %47 : vector<8x1xf32>
    %cst_38 = arith.constant 0.000000e+00 : f32
    %50 = vector.broadcast %cst_38 : f32 to vector<8x1xf32>
    %51 = arith.maximumf %49, %50 : vector<8x1xf32>
    %52 = math.absf %49 : vector<8x1xf32>
    %cst_39 = arith.constant 0.000000e+00 : f32
    %53 = vector.broadcast %cst_39 : f32 to vector<8x1xf32>
    %54 = arith.subf %53, %52 : vector<8x1xf32>
    %55 = math.exp %54 : vector<8x1xf32>
    %cst_40 = arith.constant 1.000000e+00 : f32
    %56 = vector.broadcast %cst_40 : f32 to vector<8x1xf32>
    %57 = arith.addf %56, %55 : vector<8x1xf32>
    %58 = math.log %57 : vector<8x1xf32>
    %59 = arith.addf %51, %58 : vector<8x1xf32>
    %cst_41 = arith.constant 0.000000e+00 : f32
    %60 = vector.broadcast %cst_41 : f32 to vector<8x1xf32>
    %61 = arith.subf %60, %59 : vector<8x1xf32>
    %cst_42 = arith.constant 0.000000e+00 : f32
    %62 = vector.broadcast %cst_42 : f32 to vector<8x1xf32>
    %63 = arith.maximumf %47, %62 : vector<8x1xf32>
    %64 = math.absf %47 : vector<8x1xf32>
    %cst_43 = arith.constant 0.000000e+00 : f32
    %65 = vector.broadcast %cst_43 : f32 to vector<8x1xf32>
    %66 = arith.subf %65, %64 : vector<8x1xf32>
    %67 = math.exp %66 : vector<8x1xf32>
    %cst_44 = arith.constant 1.000000e+00 : f32
    %68 = vector.broadcast %cst_44 : f32 to vector<8x1xf32>
    %69 = arith.addf %68, %67 : vector<8x1xf32>
    %70 = math.log %69 : vector<8x1xf32>
    %71 = arith.addf %63, %70 : vector<8x1xf32>
    %cst_45 = arith.constant 0.000000e+00 : f32
    %72 = vector.broadcast %cst_45 : f32 to vector<8x1xf32>
    %73 = arith.subf %72, %71 : vector<8x1xf32>
    %74 = math.exp %61 : vector<8x1xf32>
    %cst_46 = arith.constant 1.000000e+00 : f32
    %75 = vector.broadcast %cst_46 : f32 to vector<8x1xf32>
    %76 = arith.subf %75, %74 : vector<8x1xf32>
    %c0_47 = arith.constant 0 : index
    %c0_48 = arith.constant 0 : index
    %c0_49 = arith.constant 0 : index
    %77 = vector.load %arg2[%c0_47, %c0_48, %c0_49] : memref<1x8x1xf32, #tpu.memory_space<vmem>>, vector<1x8x1xf32>
    %78 = vector.shape_cast %77 : vector<1x8x1xf32> to vector<8x1xf32>
    %79 = arith.cmpf olt, %78, %74 : vector<8x1xf32>
    %80 = arith.extui %79 : vector<8x1xi1> to vector<8x1xi32>
    %81 = arith.sitofp %80 : vector<8x1xi32> to vector<8x1xf32>
    %cst_50 = arith.constant 5.000000e-01 : f32
    %82 = vector.broadcast %cst_50 : f32 to vector<8x1xf32>
    %83 = arith.cmpf ogt, %81, %82 : vector<8x1xf32>
    %84 = arith.select %83, %61, %73 : vector<8x1xi1>, vector<8x1xf32>
    %85 = arith.mulf %76, %73 : vector<8x1xf32>
    %86 = arith.mulf %74, %61 : vector<8x1xf32>
    %87 = arith.addf %85, %86 : vector<8x1xf32>
    %cst_51 = arith.constant 0.000000e+00 : f32
    %88 = vector.broadcast %cst_51 : f32 to vector<8x1xf32>
    %89 = arith.subf %88, %87 : vector<8x1xf32>
    %cst_52 = arith.constant 0.000000e+00 : f32
    %90 = vector.broadcast %cst_52 : f32 to vector<8x1xf32>
    %91 = tpu.concatenate %76, %74, %81, %84, %89, %46, %90, %90 in 1 : vector<8x1xf32>, vector<8x1xf32>, vector<8x1xf32>, vector<8x1xf32>, vector<8x1xf32>, vector<8x1xf32>, vector<8x1xf32>, vector<8x1xf32> -> vector<8x8xf32>
    %c0_53 = arith.constant 0 : index
    %c0_54 = arith.constant 0 : index
    %c0_55 = arith.constant 0 : index
    %92 = vector.load %arg15[%c0_53, %c0_54, %c0_55] : memref<1x8x8xf32, #tpu.memory_space<vmem>>, vector<1x8x8xf32>
    %93 = vector.shape_cast %92 : vector<1x8x8xf32> to vector<8x8xf32>
    %94 = vector.shape_cast %91 : vector<8x8xf32> to vector<1x8x8xf32>
    tpu.vector_store %arg15[%c0_53, %c0_54, %c0_55], %94 {strides = array<i32>} : memref<1x8x8xf32, #tpu.memory_space<vmem>>, vector<1x8x8xf32>,
    return
  }
  func.func @transform_0(%arg0: i32) -> (i32, i32, i32) {
    %c0_i32 = arith.constant 0 : i32
    %c0_i32_0 = arith.constant 0 : i32
    %c0_i32_1 = arith.constant 0 : i32
    return %arg0, %c0_i32, %c0_i32_0 : i32, i32, i32
  }
  func.func @transform_1(%arg0: i32) -> (i32, i32, i32) {
    %c0_i32 = arith.constant 0 : i32
    %c0_i32_0 = arith.constant 0 : i32
    %c0_i32_1 = arith.constant 0 : i32
    return %arg0, %c0_i32, %c0_i32_0 : i32, i32, i32
  }
  func.func @transform_2(%arg0: i32) -> (i32, i32) {
    %c0_i32 = arith.constant 0 : i32
    %c0_i32_0 = arith.constant 0 : i32
    %c0_i32_1 = arith.constant 0 : i32
    return %c0_i32, %c0_i32_0 : i32, i32
  }
  func.func @transform_3(%arg0: i32) -> (i32, i32) {
    %c0_i32 = arith.constant 0 : i32
    %c0_i32_0 = arith.constant 0 : i32
    %c0_i32_1 = arith.constant 0 : i32
    return %c0_i32, %c0_i32_0 : i32, i32
  }
  func.func @transform_4(%arg0: i32) -> (i32, i32) {
    %c0_i32 = arith.constant 0 : i32
    %c0_i32_0 = arith.constant 0 : i32
    %c0_i32_1 = arith.constant 0 : i32
    return %c0_i32, %c0_i32_0 : i32, i32
  }
  func.func @transform_5(%arg0: i32) -> (i32, i32) {
    %c0_i32 = arith.constant 0 : i32
    %c0_i32_0 = arith.constant 0 : i32
    %c0_i32_1 = arith.constant 0 : i32
    return %c0_i32, %c0_i32_0 : i32, i32
  }
  func.func @transform_6(%arg0: i32) -> (i32, i32) {
    %c0_i32 = arith.constant 0 : i32
    %c0_i32_0 = arith.constant 0 : i32
    %c0_i32_1 = arith.constant 0 : i32
    return %c0_i32, %c0_i32_0 : i32, i32
  }
  func.func @transform_7(%arg0: i32) -> (i32, i32) {
    %c0_i32 = arith.constant 0 : i32
    %c0_i32_0 = arith.constant 0 : i32
    %c0_i32_1 = arith.constant 0 : i32
    return %c0_i32, %c0_i32_0 : i32, i32
  }
  func.func @transform_8(%arg0: i32) -> (i32, i32) {
    %c0_i32 = arith.constant 0 : i32
    %c0_i32_0 = arith.constant 0 : i32
    %c0_i32_1 = arith.constant 0 : i32
    return %c0_i32, %c0_i32_0 : i32, i32
  }
  func.func @transform_9(%arg0: i32) -> (i32, i32) {
    %c0_i32 = arith.constant 0 : i32
    %c0_i32_0 = arith.constant 0 : i32
    %c0_i32_1 = arith.constant 0 : i32
    return %c0_i32, %c0_i32_0 : i32, i32
  }
  func.func @transform_10(%arg0: i32) -> (i32, i32) {
    %c0_i32 = arith.constant 0 : i32
    %c0_i32_0 = arith.constant 0 : i32
    %c0_i32_1 = arith.constant 0 : i32
    return %c0_i32, %c0_i32_0 : i32, i32
  }
  func.func @transform_11(%arg0: i32) -> (i32, i32) {
    %c0_i32 = arith.constant 0 : i32
    %c0_i32_0 = arith.constant 0 : i32
    %c0_i32_1 = arith.constant 0 : i32
    return %c0_i32, %c0_i32_0 : i32, i32
  }
  func.func @transform_12(%arg0: i32) -> (i32, i32) {
    %c0_i32 = arith.constant 0 : i32
    %c0_i32_0 = arith.constant 0 : i32
    %c0_i32_1 = arith.constant 0 : i32
    return %c0_i32, %c0_i32_0 : i32, i32
  }
  func.func @transform_13(%arg0: i32) -> (i32, i32) {
    %c0_i32 = arith.constant 0 : i32
    %c0_i32_0 = arith.constant 0 : i32
    %c0_i32_1 = arith.constant 0 : i32
    return %c0_i32, %c0_i32_0 : i32, i32
  }
  func.func @transform_14(%arg0: i32) -> (i32, i32, i32) {
    %c0_i32 = arith.constant 0 : i32
    %c0_i32_0 = arith.constant 0 : i32
    %c0_i32_1 = arith.constant 0 : i32
    return %arg0, %c0_i32, %c0_i32_0 : i32, i32, i32
  }
}

</mosaic_0001>

<llo_original>
// kernel: squeeze.13
$region0: #{squeeze.13}
  %s0 = inlined_call_operand.vmem [shape: f32[2,8], index: 0, kind: input, shape index: {}]
  %s1 = inlined_call_operand.vmem [shape: f32[16], index: 1, kind: output, shape index: {}]
  $region1: #{squeeze.13} parent=0
    #allocation0 [shape = 'u8[4096]{0}', space=vmem, size = 0x1000, scoped, tag = 'scoped mem for output reshape']
    #allocation1 [shape = 'u8[4096]{0}', space=vmem, size = 0x1000, scoped, tag = 'scoped mem for input reshape']
    %s3 = sshllo.u32 0, 2
    %v4 = vld [vmem:[%s0] sm:%s3]
    %5 = vst [vmem:[#allocation1] sm:%s3] %v4
    %v6 = vld [vmem:[#allocation1] sm:$0x1]
    %vm7 = vcmask 64512
    %8 = vst.msk [vmem:[#allocation0] sm:$0x1] %vm7, %v6
    %s9 = scalar_lea.vmem [#allocation1], 1
    %v10 = vld [vmem:[%s9] sm:$0x1]
    %11 = vrot.lane.b32.xlu0 %v10, 8
    %v12 = vpop.permute.xlu0 %11
    %vm13 = vcmask 130112
    %14 = vst.msk [vmem:[#allocation0] sm:$0x1] %vm13, %v12
    %s16 = sshllo.u32 0, 1
    %v18 = vld [vmem:[#allocation0] sm:%s16]
    %s19 = sshllo.u32 0, 1
    %20 = vst [vmem:[%s1] sm:%s19] %v18

// kernel: decision_forward.1
$region0: #{decision_forward.1}
  #allocation0 [shape = 'u32[]', space=smem, size = 0x4, offset = 0x4, fixed_abs, tag = 'smem constant byte address 0x4 - core index']
  #allocation1 [shape = 'u32[144,128]{1,0:T(1,128)}', space=vmem, size = 0x12000, scoped, tag = 'internal scratch']
  %s0 = inlined_call_operand.vmem [shape: f32[2,8,64], index: 0, kind: input, shape index: {}]
  %s1 = inlined_call_operand.vmem [shape: f32[2,8,1], index: 1, kind: input, shape index: {}]
  %s2 = inlined_call_operand.vmem [shape: f32[64,32], index: 2, kind: input, shape index: {}]
  %s3 = inlined_call_operand.vmem [shape: f32[1,32], index: 3, kind: input, shape index: {}]
  %s4 = inlined_call_operand.vmem [shape: f32[32,32], index: 4, kind: input, shape index: {}]
  %s5 = inlined_call_operand.vmem [shape: f32[1,32], index: 5, kind: input, shape index: {}]
  %s6 = inlined_call_operand.vmem [shape: f32[32,32], index: 6, kind: input, shape index: {}]
  %s7 = inlined_call_operand.vmem [shape: f32[1,32], index: 7, kind: input, shape index: {}]
  %s8 = inlined_call_operand.vmem [shape: f32[32,32], index: 8, kind: input, shape index: {}]
  %s9 = inlined_call_operand.vmem [shape: f32[1,32], index: 9, kind: input, shape index: {}]
  %s10 = inlined_call_operand.vmem [shape: f32[32,64], index: 10, kind: input, shape index: {}]
  %s11 = inlined_call_operand.vmem [shape: f32[1,64], index: 11, kind: input, shape index: {}]
  %s12 = inlined_call_operand.vmem [shape: f32[64,8], index: 12, kind: input, shape index: {}]
  %s13 = inlined_call_operand.vmem [shape: f32[1,8], index: 13, kind: input, shape index: {}]
  %s14 = inlined_call_operand.vmem [shape: f32[2,8,8], index: 14, kind: output, shape index: {}]
  %s15 = sld [smem:[#allocation0]]
  $region89: #{decision_forward.1} parent=0
    _
  %s17 = ssub.s32 1, %s15
  %s18 = scalar_select 0, %s17, %s15
  loop: start=0, step=1, limit=4
  $region2: #{decision_forward.1} parent=0 // loop_pre_header
    _
  $region3: #{decision_forward.1} parent=0 // loop_header
    %s20 = sphi 0, %s24
    %p21 = scmp.ge.s32.totalorder %s20, 4
    %s30 = sphi 0, %s32
    %s33 = sphi 0, %s30
    %s34 = sphi 0, %s33
    %s50 = sphi 0, %s34
    %s56 = sphi 0, %s58
    %s59 = sphi 0, %s56
    %s60 = sphi 0, %s59
    %s76 = sphi 0, %s60
    %s80 = sphi 0, %s80
    %s82 = sphi 0, %s80
    %s83 = sphi 0, %s82
    %s97 = sphi 0, %s83
    %s101 = sphi 0, %s101
    %s103 = sphi 0, %s101
    %s104 = sphi 0, %s103
    %s118 = sphi 0, %s104
    %s122 = sphi 0, %s122
    %s124 = sphi 0, %s122
    %s125 = sphi 0, %s124
    %s139 = sphi 0, %s125
    %s143 = sphi 0, %s143
    %s145 = sphi 0, %s143
    %s146 = sphi 0, %s145
    %s160 = sphi 0, %s146
    %s164 = sphi 0, %s164
    %s166 = sphi 0, %s164
    %s167 = sphi 0, %s166
    %s181 = sphi 0, %s167
    %s185 = sphi 0, %s185
    %s187 = sphi 0, %s185
    %s188 = sphi 0, %s187
    %s202 = sphi 0, %s188
    %s206 = sphi 0, %s206
    %s208 = sphi 0, %s206
    %s209 = sphi 0, %s208
    %s223 = sphi 0, %s209
    %s227 = sphi 0, %s227
    %s229 = sphi 0, %s227
    %s230 = sphi 0, %s229
    %s244 = sphi 0, %s230
    %s248 = sphi 0, %s248
    %s250 = sphi 0, %s248
    %s251 = sphi 0, %s250
    %s265 = sphi 0, %s251
    %s269 = sphi 0, %s269
    %s271 = sphi 0, %s269
    %s272 = sphi 0, %s271
    %s286 = sphi 0, %s272
    %s290 = sphi 0, %s290
    %s292 = sphi 0, %s290
    %s293 = sphi 0, %s292
    %s307 = sphi 0, %s293
    %s311 = sphi 0, %s311
    %s313 = sphi 0, %s311
    %s314 = sphi 0, %s313
    %s328 = sphi 0, %s314
    %s334 = sphi 0, %s336
    %s337 = sphi 0, %s334
    %s338 = sphi 0, %s337
    %s354 = sphi 0, %s338
  $region4: #{decision_forward.1} parent=0 // loop_header_branch
    %23 = sbr.rel (%p21) target = $region8
  $region5: #{decision_forward.1} parent=0 // loop_body
    %s25 = ssub.s32 %s20, 1
    %s26 = ssub.s32 %s20, 2
    %s27 = sadd.s32 %s20, 1
    %s28 = ssub.s32 %s20, %s27
    %p29 = scmp.eq.s32.totalorder %s28, 0
    %s31 = sadd.s32 %s30, 1
    %s32 = scalar_select %p29, %s30, %s31
    %p35 = pneg %p29
    %p36 = scmp.eq.s32.totalorder %s20, 1
    %p37 = por %p35, %p36
    %p38 = scmp.ne.s32.totalorder %s30, %s33
    %p39 = scmp.eq.s32.totalorder %s20, 0
    %p40 = por %p38, %p39
    %p41 = scmp.ne.s32.totalorder %s30, %s33
    %p42 = scmp.eq.s32.totalorder %s25, 1
    %p43 = por %p41, %p42
    %p44 = scmp.ne.s32.totalorder %s33, %s34
    %p45 = scmp.eq.s32.totalorder %s25, 0
    %p46 = por %p44, %p45
    %p47 = scmp.ne.s32.totalorder %s33, %s34
    %p48 = scmp.eq.s32.totalorder %s26, 1
    %p49 = por %p47, %p48
    %p51 = scmp.ne.s32.totalorder %s34, %s50
    %p52 = scmp.eq.s32.totalorder %s26, 0
    %p53 = por %p51, %p52
    %s54 = ssub.s32 %s20, %s27
    %p55 = scmp.eq.s32.totalorder %s54, 0
    %s57 = sadd.s32 %s56, 1
    %s58 = scalar_select %p55, %s56, %s57
    %p61 = pneg %p55
    %p62 = scmp.eq.s32.totalorder %s20, 1
    %p63 = por %p61, %p62
    %p64 = scmp.ne.s32.totalorder %s56, %s59
    %p65 = scmp.eq.s32.totalorder %s20, 0
    %p66 = por %p64, %p65
    %p67 = scmp.ne.s32.totalorder %s56, %s59
    %p68 = scmp.eq.s32.totalorder %s25, 1
    %p69 = por %p67, %p68
    %p70 = scmp.ne.s32.totalorder %s59, %s60
    %p71 = scmp.eq.s32.totalorder %s25, 0
    %p72 = por %p70, %p71
    %p73 = scmp.ne.s32.totalorder %s59, %s60
    %p74 = scmp.eq.s32.totalorder %s26, 1
    %p75 = por %p73, %p74
    %p77 = scmp.ne.s32.totalorder %s60, %s76
    %p78 = scmp.eq.s32.totalorder %s26, 0
    %p79 = por %p77, %p78
    %s81 = sadd.s32 %s80, 1
    %p84 = scmp.eq.s32.totalorder %s20, 1
    %p85 = scmp.ne.s32.totalorder %s80, %s82
    %p86 = scmp.eq.s32.totalorder %s20, 0
    %p87 = por %p85, %p86
    %p88 = scmp.ne.s32.totalorder %s80, %s82
    %p89 = scmp.eq.s32.totalorder %s25, 1
    %p90 = por %p88, %p89
    %p91 = scmp.ne.s32.totalorder %s82, %s83
    %p92 = scmp.eq.s32.totalorder %s25, 0
    %p93 = por %p91, %p92
    %p94 = scmp.ne.s32.totalorder %s82, %s83
    %p95 = scmp.eq.s32.totalorder %s26, 1
    %p96 = por %p94, %p95
    %p98 = scmp.ne.s32.totalorder %s83, %s97
    %p99 = scmp.eq.s32.totalorder %s26, 0
    %p100 = por %p98, %p99
    %s102 = sadd.s32 %s101, 1
    %p105 = scmp.eq.s32.totalorder %s20, 1
    %p106 = scmp.ne.s32.totalorder %s101, %s103
    %p107 = scmp.eq.s32.totalorder %s20, 0
    %p108 = por %p106, %p107
    %p109 = scmp.ne.s32.totalorder %s101, %s103
    %p110 = scmp.eq.s32.totalorder %s25, 1
    %p111 = por %p109, %p110
    %p112 = scmp.ne.s32.totalorder %s103, %s104
    %p113 = scmp.eq.s32.totalorder %s25, 0
    %p114 = por %p112, %p113
    %p115 = scmp.ne.s32.totalorder %s103, %s104
    %p116 = scmp.eq.s32.totalorder %s26, 1
    %p117 = por %p115, %p116
    %p119 = scmp.ne.s32.totalorder %s104, %s118
    %p120 = scmp.eq.s32.totalorder %s26, 0
    %p121 = por %p119, %p120
    %s123 = sadd.s32 %s122, 1
    %p126 = scmp.eq.s32.totalorder %s20, 1
    %p127 = scmp.ne.s32.totalorder %s122, %s124
    %p128 = scmp.eq.s32.totalorder %s20, 0
    %p129 = por %p127, %p128
    %p130 = scmp.ne.s32.totalorder %s122, %s124
    %p131 = scmp.eq.s32.totalorder %s25, 1
    %p132 = por %p130, %p131
    %p133 = scmp.ne.s32.totalorder %s124, %s125
    %p134 = scmp.eq.s32.totalorder %s25, 0
    %p135 = por %p133, %p134
    %p136 = scmp.ne.s32.totalorder %s124, %s125
    %p137 = scmp.eq.s32.totalorder %s26, 1
    %p138 = por %p136, %p137
    %p140 = scmp.ne.s32.totalorder %s125, %s139
    %p141 = scmp.eq.s32.totalorder %s26, 0
    %p142 = por %p140, %p141
    %s144 = sadd.s32 %s143, 1
    %p147 = scmp.eq.s32.totalorder %s20, 1
    %p148 = scmp.ne.s32.totalorder %s143, %s145
    %p149 = scmp.eq.s32.totalorder %s20, 0
    %p150 = por %p148, %p149
    %p151 = scmp.ne.s32.totalorder %s143, %s145
    %p152 = scmp.eq.s32.totalorder %s25, 1
    %p153 = por %p151, %p152
    %p154 = scmp.ne.s32.totalorder %s145, %s146
    %p155 = scmp.eq.s32.totalorder %s25, 0
    %p156 = por %p154, %p155
    %p157 = scmp.ne.s32.totalorder %s145, %s146
    %p158 = scmp.eq.s32.totalorder %s26, 1
    %p159 = por %p157, %p158
    %p161 = scmp.ne.s32.totalorder %s146, %s160
    %p162 = scmp.eq.s32.totalorder %s26, 0
    %p163 = por %p161, %p162
    %s165 = sadd.s32 %s164, 1
    %p168 = scmp.eq.s32.totalorder %s20, 1
    %p169 = scmp.ne.s32.totalorder %s164, %s166
    %p170 = scmp.eq.s32.totalorder %s20, 0
    %p171 = por %p169, %p170
    %p172 = scmp.ne.s32.totalorder %s164, %s166
    %p173 = scmp.eq.s32.totalorder %s25, 1
    %p174 = por %p172, %p173
    %p175 = scmp.ne.s32.totalorder %s166, %s167
    %p176 = scmp.eq.s32.totalorder %s25, 0
    %p177 = por %p175, %p176
    %p178 = scmp.ne.s32.totalorder %s166, %s167
    %p179 = scmp.eq.s32.totalorder %s26, 1
    %p180 = por %p178, %p179
    %p182 = scmp.ne.s32.totalorder %s167, %s181
    %p183 = scmp.eq.s32.totalorder %s26, 0
    %p184 = por %p182, %p183
    %s186 = sadd.s32 %s185, 1
    %p189 = scmp.eq.s32.totalorder %s20, 1
    %p190 = scmp.ne.s32.totalorder %s185, %s187
    %p191 = scmp.eq.s32.totalorder %s20, 0
    %p192 = por %p190, %p191
    %p193 = scmp.ne.s32.totalorder %s185, %s187
    %p194 = scmp.eq.s32.totalorder %s25, 1
    %p195 = por %p193, %p194
    %p196 = scmp.ne.s32.totalorder %s187, %s188
    %p197 = scmp.eq.s32.totalorder %s25, 0
    %p198 = por %p196, %p197
    %p199 = scmp.ne.s32.totalorder %s187, %s188
    %p200 = scmp.eq.s32.totalorder %s26, 1
    %p201 = por %p199, %p200
    %p203 = scmp.ne.s32.totalorder %s188, %s202
    %p204 = scmp.eq.s32.totalorder %s26, 0
    %p205 = por %p203, %p204
    %s207 = sadd.s32 %s206, 1
    %p210 = scmp.eq.s32.totalorder %s20, 1
    %p211 = scmp.ne.s32.totalorder %s206, %s208
    %p212 = scmp.eq.s32.totalorder %s20, 0
    %p213 = por %p211, %p212
    %p214 = scmp.ne.s32.totalorder %s206, %s208
    %p215 = scmp.eq.s32.totalorder %s25, 1
    %p216 = por %p214, %p215
    %p217 = scmp.ne.s32.totalorder %s208, %s209
    %p218 = scmp.eq.s32.totalorder %s25, 0
    %p219 = por %p217, %p218
    %p220 = scmp.ne.s32.totalorder %s208, %s209
    %p221 = scmp.eq.s32.totalorder %s26, 1
    %p222 = por %p220, %p221
    %p224 = scmp.ne.s32.totalorder %s209, %s223
    %p225 = scmp.eq.s32.totalorder %s26, 0
    %p226 = por %p224, %p225
    %s228 = sadd.s32 %s227, 1
    %p231 = scmp.eq.s32.totalorder %s20, 1
    %p232 = scmp.ne.s32.totalorder %s227, %s229
    %p233 = scmp.eq.s32.totalorder %s20, 0
    %p234 = por %p232, %p233
    %p235 = scmp.ne.s32.totalorder %s227, %s229
    %p236 = scmp.eq.s32.totalorder %s25, 1
    %p237 = por %p235, %p236
    %p238 = scmp.ne.s32.totalorder %s229, %s230
    %p239 = scmp.eq.s32.totalorder %s25, 0
    %p240 = por %p238, %p239
    %p241 = scmp.ne.s32.totalorder %s229, %s230
    %p242 = scmp.eq.s32.totalorder %s26, 1
    %p243 = por %p241, %p242
    %p245 = scmp.ne.s32.totalorder %s230, %s244
    %p246 = scmp.eq.s32.totalorder %s26, 0
    %p247 = por %p245, %p246
    %s249 = sadd.s32 %s248, 1
    %p252 = scmp.eq.s32.totalorder %s20, 1
    %p253 = scmp.ne.s32.totalorder %s248, %s250
    %p254 = scmp.eq.s32.totalorder %s20, 0
    %p255 = por %p253, %p254
    %p256 = scmp.ne.s32.totalorder %s248, %s250
    %p257 = scmp.eq.s32.totalorder %s25, 1
    %p258 = por %p256, %p257
    %p259 = scmp.ne.s32.totalorder %s250, %s251
    %p260 = scmp.eq.s32.totalorder %s25, 0
    %p261 = por %p259, %p260
    %p262 = scmp.ne.s32.totalorder %s250, %s251
    %p263 = scmp.eq.s32.totalorder %s26, 1
    %p264 = por %p262, %p263
    %p266 = scmp.ne.s32.totalorder %s251, %s265
    %p267 = scmp.eq.s32.totalorder %s26, 0
    %p268 = por %p266, %p267
    %s270 = sadd.s32 %s269, 1
    %p273 = scmp.eq.s32.totalorder %s20, 1
    %p274 = scmp.ne.s32.totalorder %s269, %s271
    %p275 = scmp.eq.s32.totalorder %s20, 0
    %p276 = por %p274, %p275
    %p277 = scmp.ne.s32.totalorder %s269, %s271
    %p278 = scmp.eq.s32.totalorder %s25, 1
    %p279 = por %p277, %p278
    %p280 = scmp.ne.s32.totalorder %s271, %s272
    %p281 = scmp.eq.s32.totalorder %s25, 0
    %p282 = por %p280, %p281
    %p283 = scmp.ne.s32.totalorder %s271, %s272
    %p284 = scmp.eq.s32.totalorder %s26, 1
    %p285 = por %p283, %p284
    %p287 = scmp.ne.s32.totalorder %s272, %s286
    %p288 = scmp.eq.s32.totalorder %s26, 0
    %p289 = por %p287, %p288
    %s291 = sadd.s32 %s290, 1
    %p294 = scmp.eq.s32.totalorder %s20, 1
    %p295 = scmp.ne.s32.totalorder %s290, %s292
    %p296 = scmp.eq.s32.totalorder %s20, 0
    %p297 = por %p295, %p296
    %p298 = scmp.ne.s32.totalorder %s290, %s292
    %p299 = scmp.eq.s32.totalorder %s25, 1
    %p300 = por %p298, %p299
    %p301 = scmp.ne.s32.totalorder %s292, %s293
    %p302 = scmp.eq.s32.totalorder %s25, 0
    %p303 = por %p301, %p302
    %p304 = scmp.ne.s32.totalorder %s292, %s293
    %p305 = scmp.eq.s32.totalorder %s26, 1
    %p306 = por %p304, %p305
    %p308 = scmp.ne.s32.totalorder %s293, %s307
    %p309 = scmp.eq.s32.totalorder %s26, 0
    %p310 = por %p308, %p309
    %s312 = sadd.s32 %s311, 1
    %p315 = scmp.eq.s32.totalorder %s20, 1
    %p316 = scmp.ne.s32.totalorder %s311, %s313
    %p317 = scmp.eq.s32.totalorder %s20, 0
    %p318 = por %p316, %p317
    %p319 = scmp.ne.s32.totalorder %s311, %s313
    %p320 = scmp.eq.s32.totalorder %s25, 1
    %p321 = por %p319, %p320
    %p322 = scmp.ne.s32.totalorder %s313, %s314
    %p323 = scmp.eq.s32.totalorder %s25, 0
    %p324 = por %p322, %p323
    %p325 = scmp.ne.s32.totalorder %s313, %s314
    %p326 = scmp.eq.s32.totalorder %s26, 1
    %p327 = por %p325, %p326
    %p329 = scmp.ne.s32.totalorder %s314, %s328
    %p330 = scmp.eq.s32.totalorder %s26, 0
    %p331 = por %p329, %p330
    %s332 = ssub.s32 %s20, %s27
    %p333 = scmp.eq.s32.totalorder %s332, 0
    %s335 = sadd.s32 %s334, 1
    %s336 = scalar_select %p333, %s334, %s335
    %p339 = pneg %p333
    %p340 = scmp.eq.s32.totalorder %s20, 1
    %p341 = por %p339, %p340
    %p342 = scmp.ne.s32.totalorder %s334, %s337
    %p343 = scmp.eq.s32.totalorder %s20, 0
    %p344 = por %p342, %p343
    %p345 = scmp.ne.s32.totalorder %s334, %s337
    %p346 = scmp.eq.s32.totalorder %s25, 1
    %p347 = por %p345, %p346
    %p348 = scmp.ne.s32.totalorder %s337, %s338
    %p349 = scmp.eq.s32.totalorder %s25, 0
    %p350 = por %p348, %p349
    %p351 = scmp.ne.s32.totalorder %s337, %s338
    %p352 = scmp.eq.s32.totalorder %s26, 1
    %p353 = por %p351, %p352
    %p355 = scmp.ne.s32.totalorder %s338, %s354
    %p356 = scmp.eq.s32.totalorder %s26, 0
    %p357 = por %p355, %p356
    %p358 = scmp.le.s32.totalorder 1, %s20
    %p359 = scmp.lt.s32.totalorder %s20, 3
    %p360 = pnand %p358, %p359
    %p361 = pneg %p360
    // Predicated region
    $region9: #{decision_forward.1} parent=5 // pred_check
      _
    $region10: #{decision_forward.1} parent=5 // pred_check_branch
      %363 = sbr.rel (%p360) target = $region12
    $region11: #{decision_forward.1} parent=5 // pred_region
      %s364 = ssub.s32 %s20, 1
      // Predicated region
      $region13: #{decision_forward.1} parent=11 // pred_check
        %p365 = pneg %p93
      $region14: #{decision_forward.1} parent=11 // pred_check_branch
        %367 = sbr.rel (%p365) target = $region16
      $region15: #{decision_forward.1} parent=11 // pred_region
        _
      $region16: #{decision_forward.1} parent=11 // pred_fallthru
        _
      // Predicated region
      $region17: #{decision_forward.1} parent=11 // pred_check
        %p368 = pneg %p114
      $region18: #{decision_forward.1} parent=11 // pred_check_branch
        %370 = sbr.rel (%p368) target = $region20
      $region19: #{decision_forward.1} parent=11 // pred_region
        _
      $region20: #{decision_forward.1} parent=11 // pred_fallthru
        _
      // Predicated region
      $region21: #{decision_forward.1} parent=11 // pred_check
        %p371 = pneg %p135
      $region22: #{decision_forward.1} parent=11 // pred_check_branch
        %373 = sbr.rel (%p371) target = $region24
      $region23: #{decision_forward.1} parent=11 // pred_region
        _
      $region24: #{decision_forward.1} parent=11 // pred_fallthru
        _
      // Predicated region
      $region25: #{decision_forward.1} parent=11 // pred_check
        %p374 = pneg %p156
      $region26: #{decision_forward.1} parent=11 // pred_check_branch
        %376 = sbr.rel (%p374) target = $region28
      $region27: #{decision_forward.1} parent=11 // pred_region
        _
      $region28: #{decision_forward.1} parent=11 // pred_fallthru
        _
      // Predicated region
      $region29: #{decision_forward.1} parent=11 // pred_check
        %p377 = pneg %p177
      $region30: #{decision_forward.1} parent=11 // pred_check_branch
        %379 = sbr.rel (%p377) target = $region32
      $region31: #{decision_forward.1} parent=11 // pred_region
        _
      $region32: #{decision_forward.1} parent=11 // pred_fallthru
        _
      // Predicated region
      $region33: #{decision_forward.1} parent=11 // pred_check
        %p380 = pneg %p198
      $region34: #{decision_forward.1} parent=11 // pred_check_branch
        %382 = sbr.rel (%p380) target = $region36
      $region35: #{decision_forward.1} parent=11 // pred_region
        _
      $region36: #{decision_forward.1} parent=11 // pred_fallthru
        _
      // Predicated region
      $region37: #{decision_forward.1} parent=11 // pred_check
        %p383 = pneg %p219
      $region38: #{decision_forward.1} parent=11 // pred_check_branch
        %385 = sbr.rel (%p383) target = $region40
      $region39: #{decision_forward.1} parent=11 // pred_region
        _
      $region40: #{decision_forward.1} parent=11 // pred_fallthru
        _
      // Predicated region
      $region41: #{decision_forward.1} parent=11 // pred_check
        %p386 = pneg %p240
      $region42: #{decision_forward.1} parent=11 // pred_check_branch
        %388 = sbr.rel (%p386) target = $region44
      $region43: #{decision_forward.1} parent=11 // pred_region
        _
      $region44: #{decision_forward.1} parent=11 // pred_fallthru
        _
      // Predicated region
      $region45: #{decision_forward.1} parent=11 // pred_check
        %p389 = pneg %p261
      $region46: #{decision_forward.1} parent=11 // pred_check_branch
        %391 = sbr.rel (%p389) target = $region48
      $region47: #{decision_forward.1} parent=11 // pred_region
        _
      $region48: #{decision_forward.1} parent=11 // pred_fallthru
        _
      // Predicated region
      $region49: #{decision_forward.1} parent=11 // pred_check
        %p392 = pneg %p282
      $region50: #{decision_forward.1} parent=11 // pred_check_branch
        %394 = sbr.rel (%p392) target = $region52
      $region51: #{decision_forward.1} parent=11 // pred_region
        _
      $region52: #{decision_forward.1} parent=11 // pred_fallthru
        _
      // Predicated region
      $region53: #{decision_forward.1} parent=11 // pred_check
        %p395 = pneg %p303
      $region54: #{decision_forward.1} parent=11 // pred_check_branch
        %397 = sbr.rel (%p395) target = $region56
      $region55: #{decision_forward.1} parent=11 // pred_region
        _
      $region56: #{decision_forward.1} parent=11 // pred_fallthru
        _
      // Predicated region
      $region57: #{decision_forward.1} parent=11 // pred_check
        %p398 = pneg %p324
      $region58: #{decision_forward.1} parent=11 // pred_check_branch
        %400 = sbr.rel (%p398) target = $region60
      $region59: #{decision_forward.1} parent=11 // pred_region
        _
      $region60: #{decision_forward.1} parent=11 // pred_fallthru
        _
    $region12: #{decision_forward.1} parent=5 // pred_fallthru
      _
    %p401 = scmp.lt.s32.totalorder %s20, 2
    // Predicated region
    $region61: #{decision_forward.1} parent=5 // pred_check
      %p402 = pneg %p401
    $region62: #{decision_forward.1} parent=5 // pred_check_branch
      %404 = sbr.rel (%p402) target = $region64
    $region63: #{decision_forward.1} parent=5 // pred_region
      // Predicated region
      $region65: #{decision_forward.1} parent=63 // pred_check
        %p405 = pneg %p40
      $region66: #{decision_forward.1} parent=63 // pred_check_branch
        %407 = sbr.rel (%p405) target = $region68
      $region67: #{decision_forward.1} parent=63 // pred_region
        %p408 = scmp.lt.s32.totalorder %s20, 1
        %s409 = scalar_select %p408, %s20, 1
        %s410 = smul.addr %s409, 8
        %s411 = scalar_lea.vmem %s0, %s410
      $region68: #{decision_forward.1} parent=63 // pred_fallthru
        _
      // Predicated region
      $region69: #{decision_forward.1} parent=63 // pred_check
        %p412 = pneg %p66
      $region70: #{decision_forward.1} parent=63 // pred_check_branch
        %414 = sbr.rel (%p412) target = $region72
      $region71: #{decision_forward.1} parent=63 // pred_region
        %p415 = scmp.lt.s32.totalorder %s20, 1
        %s416 = scalar_select %p415, %s20, 1
        %s417 = smul.addr %s416, 8
        %s418 = scalar_lea.vmem %s1, %s417
      $region72: #{decision_forward.1} parent=63 // pred_fallthru
        _
    $region64: #{decision_forward.1} parent=5 // pred_fallthru
      _
    %p419 = scmp.le.s32.totalorder 1, %s20
    %p420 = scmp.lt.s32.totalorder %s20, 3
    %p421 = pnand %p419, %p420
    %p422 = pneg %p421
    // Predicated region
    $region73: #{decision_forward.1} parent=5 // pred_check
      _
    $region74: #{decision_forward.1} parent=5 // pred_check_branch
      %424 = sbr.rel (%p421) target = $region76
    $region75: #{decision_forward.1} parent=5 // pred_region
      %s425 = ssub.s32 %s20, 1
      %p426 = scmp.lt.s32.totalorder %s25, 1
      %s427 = scalar_select %p426, %s25, 1
      %s428 = smul.addr %s427, 8
      %s429 = scalar_lea.vmem %s0, %s428
      %p430 = pneg %p46
      %p431 = pneg %p43
      %p432 = scmp.lt.s32.totalorder %s25, 1
      %s433 = scalar_select %p432, %s25, 1
      %s434 = smul.addr %s433, 8
      %s435 = scalar_lea.vmem %s1, %s434
      %p436 = pneg %p72
      %p437 = pneg %p69
      %p438 = pneg %p93
      %p439 = pneg %p90
      %p440 = pneg %p114
      %p441 = pneg %p111
      %p442 = pneg %p135
      %p443 = pneg %p132
      %p444 = pneg %p156
      %p445 = pneg %p153
      %p446 = pneg %p177
      %p447 = pneg %p174
      %p448 = pneg %p198
      %p449 = pneg %p195
      %p450 = pneg %p219
      %p451 = pneg %p216
      %p452 = pneg %p240
      %p453 = pneg %p237
      %p454 = pneg %p261
      %p455 = pneg %p258
      %p456 = pneg %p282
      %p457 = pneg %p279
      %p458 = pneg %p303
      %p459 = pneg %p300
      %p460 = pneg %p324
      %p461 = pneg %p321
      %p462 = pneg %p350
      %p463 = pneg %p347
      %p464 = scmp.lt.s32.totalorder %s25, 1
      %s465 = scalar_select %p464, %s25, 1
      %s466 = smul.addr %s465, 8
      %s467 = scalar_lea.vmem %s14, %s466
      %p468 = scmp.lt.s32.totalorder %s25, 1
      %s469 = scalar_select %p468, %s25, 1
      %s470 = smul.addr %s469, 8
      %s471 = scalar_lea.vmem %s0, %s470
      %p472 = scmp.lt.s32.totalorder %s25, 1
      %s473 = scalar_select %p472, %s25, 1
      %s474 = smul.addr %s473, 8
      %s475 = scalar_lea.vmem %s1, %s474
      %p476 = scmp.lt.s32.totalorder %s25, 1
      %s477 = scalar_select %p476, %s25, 1
      %s478 = smul.addr %s477, 8
      %s479 = scalar_lea.vmem %s14, %s478
      %v480 = vld [vmem:[%s471] sm:$0xff]
      %v481 = vld [vmem:[%s2] sm:$0xff]
      %v482 = vld [vmem:[%s2 + $0x8] sm:$0xff]
      %v483 = vld [vmem:[%s2 + $0x10] sm:$0xff]
      %v484 = vld [vmem:[%s2 + $0x18] sm:$0xff]
      %v485 = vld [vmem:[%s2 + $0x20] sm:$0xff]
      %v486 = vld [vmem:[%s2 + $0x28] sm:$0xff]
      %v487 = vld [vmem:[%s2 + $0x30] sm:$0xff]
      %v488 = vld [vmem:[%s2 + $0x38] sm:$0xff]
      %v489 = vld [vmem:[%s3] sm:$0x1]
      %v491 = vlaneseq
      %v492 = vshrl.u32 %v491, 7
      %v493 = vsub.s32 0, %v492
      %v494 = vrot.slane %v489, %v493
      %vm496 = vcmask 523264
      %v498 = vsel %vm496, %v480, 0
      %500 = vmatprep.subr.mxu0 0.0
      %501 = vmatpush1.msra.mxu0 %v481
      %502 = vmatprep.subr.mxu0 0.0
      %503 = vmatpush1.msra.mxu0 %v482
      %504 = vmatprep.subr.mxu0 0.0
      %505 = vmatpush1.msra.mxu0 %v483
      %506 = vmatprep.subr.mxu0 0.0
      %507 = vmatpush1.msra.mxu0 %v484
      %508 = vmatprep.subr.mxu0 0.0
      %509 = vmatpush1.msra.mxu0 %v485
      %510 = vmatprep.subr.mxu0 0.0
      %511 = vmatpush1.msra.mxu0 %v486
      %512 = vmatprep.subr.mxu0 0.0
      %513 = vmatpush1.msra.mxu0 %v487
      %514 = vmatprep.subr.mxu0 0.0
      %515 = vmatpush1.msra.mxu0 %v488
      %516 = vmatprep.subr.mxu0 0.0
      %517 = vmatpush1.msra.mxu0 0.0
      %518 = vmatprep.subr.mxu0 0.0
      %519 = vmatpush1.msra.mxu0 0.0
      %520 = vmatprep.subr.mxu0 0.0
      %521 = vmatpush1.msra.mxu0 0.0
      %522 = vmatprep.subr.mxu0 0.0
      %523 = vmatpush1.msra.mxu0 0.0
      %524 = vmatprep.subr.mxu0 0.0
      %525 = vmatpush1.msra.mxu0 0.0
      %526 = vmatprep.subr.mxu0 0.0
      %527 = vmatpush1.msra.mxu0 0.0
      %528 = vmatprep.subr.mxu0 0.0
      %529 = vmatpush1.msra.mxu0 0.0
      %530 = vmatprep.subr.mxu0 0.0
      %531 = vmatpush1.msra.mxu0 0.0
      %532 = vmatprep.subr.mxu0 0.0
      %533 = vmatpush1.msra.mxu0 0.0
      %534 = vmatprep.subr.mxu0 0.0
      %535 = vmatpush1.msra.mxu0 0.0
      %536 = vmatprep.subr.mxu0 0.0
      %537 = vmatpush1.msra.mxu0 0.0
      %538 = vmatprep.subr.mxu0 0.0
      %539 = vmatpush1.msra.mxu0 0.0
      %540 = vmatprep.subr.mxu0 0.0
      %541 = vmatpush1.msra.mxu0 0.0
      %542 = vmatprep.subr.mxu0 0.0
      %543 = vmatpush1.msra.mxu0 0.0
      %544 = vmatprep.subr.mxu0 0.0
      %545 = vmatpush1.msra.mxu0 0.0
      %546 = vmatprep.subr.mxu0 0.0
      %547 = vmatpush1.msra.mxu0 0.0
      %548 = vmatprep.subr.mxu0 0.0
      %549 = vmatpush1.msra.mxu0 0.0
      %550 = vmatprep.subr.mxu0 0.0
      %551 = vmatpush1.msra.mxu0 0.0
      %552 = vmatprep.subr.mxu0 0.0
      %553 = vmatpush1.msra.mxu0 0.0
      %554 = vmatprep.subr.mxu0 0.0
      %555 = vmatpush1.msra.mxu0 0.0
      %556 = vmatprep.subr.mxu0 0.0
      %557 = vmatpush1.msra.mxu0 0.0
      %558 = vmatprep.subr.mxu0 0.0
      %559 = vmatpush1.msra.mxu0 0.0
      %560 = vmatprep.subr.mxu0 0.0
      %561 = vmatpush1.msra.mxu0 0.0
      %562 = vmatprep.subr.mxu0 0.0
      %563 = vmatpush1.msra.mxu0 0.0
      %564 = vmatprep.mubr.f32.mxu0 0.0
      %565 = vmatmul.mubr.f32.gmra.mrb[0].mxu0 %v498
      %v566 = vpop.f32.mrb[0].mxu0
      %v567 = vadd.f32 %v494, %v566
      %v568 = vpop.f32.mrb[0].mxu0
      %569 = vdwg.mxu0
      %v570 = vmax.f32 %v567, 0.0
      %v571 = vld [vmem:[%s4] sm:$0xff]
      %v572 = vld [vmem:[%s4 + $0x8] sm:$0xff]
      %v573 = vld [vmem:[%s4 + $0x10] sm:$0xff]
      %v574 = vld [vmem:[%s4 + $0x18] sm:$0xff]
      %v575 = vld [vmem:[%s5] sm:$0x1]
      %v577 = vlaneseq
      %v578 = vshrl.u32 %v577, 7
      %v579 = vsub.s32 0, %v578
      %v580 = vrot.slane %v575, %v579
      %vm582 = vcmask 261120
      %v584 = vsel %vm582, %v570, 0
      %586 = vmatprep.subr.mxu0 0.0
      %587 = vmatpush1.msra.mxu0 %v571
      %588 = vmatprep.subr.mxu0 0.0
      %589 = vmatpush1.msra.mxu0 %v572
      %590 = vmatprep.subr.mxu0 0.0
      %591 = vmatpush1.msra.mxu0 %v573
      %592 = vmatprep.subr.mxu0 0.0
      %593 = vmatpush1.msra.mxu0 %v574
      %594 = vmatprep.subr.mxu0 0.0
      %595 = vmatpush1.msra.mxu0 0.0
      %596 = vmatprep.subr.mxu0 0.0
      %597 = vmatpush1.msra.mxu0 0.0
      %598 = vmatprep.subr.mxu0 0.0
      %599 = vmatpush1.msra.mxu0 0.0
      %600 = vmatprep.subr.mxu0 0.0
      %601 = vmatpush1.msra.mxu0 0.0
      %602 = vmatprep.subr.mxu0 0.0
      %603 = vmatpush1.msra.mxu0 0.0
      %604 = vmatprep.subr.mxu0 0.0
      %605 = vmatpush1.msra.mxu0 0.0
      %606 = vmatprep.subr.mxu0 0.0
      %607 = vmatpush1.msra.mxu0 0.0
      %608 = vmatprep.subr.mxu0 0.0
      %609 = vmatpush1.msra.mxu0 0.0
      %610 = vmatprep.subr.mxu0 0.0
      %611 = vmatpush1.msra.mxu0 0.0
      %612 = vmatprep.subr.mxu0 0.0
      %613 = vmatpush1.msra.mxu0 0.0
      %614 = vmatprep.subr.mxu0 0.0
      %615 = vmatpush1.msra.mxu0 0.0
      %616 = vmatprep.subr.mxu0 0.0
      %617 = vmatpush1.msra.mxu0 0.0
      %618 = vmatprep.subr.mxu0 0.0
      %619 = vmatpush1.msra.mxu0 0.0
      %620 = vmatprep.subr.mxu0 0.0
      %621 = vmatpush1.msra.mxu0 0.0
      %622 = vmatprep.subr.mxu0 0.0
      %623 = vmatpush1.msra.mxu0 0.0
      %624 = vmatprep.subr.mxu0 0.0
      %625 = vmatpush1.msra.mxu0 0.0
      %626 = vmatprep.subr.mxu0 0.0
      %627 = vmatpush1.msra.mxu0 0.0
      %628 = vmatprep.subr.mxu0 0.0
      %629 = vmatpush1.msra.mxu0 0.0
      %630 = vmatprep.subr.mxu0 0.0
      %631 = vmatpush1.msra.mxu0 0.0
      %632 = vmatprep.subr.mxu0 0.0
      %633 = vmatpush1.msra.mxu0 0.0
      %634 = vmatprep.subr.mxu0 0.0
      %635 = vmatpush1.msra.mxu0 0.0
      %636 = vmatprep.subr.mxu0 0.0
      %637 = vmatpush1.msra.mxu0 0.0
      %638 = vmatprep.subr.mxu0 0.0
      %639 = vmatpush1.msra.mxu0 0.0
      %640 = vmatprep.subr.mxu0 0.0
      %641 = vmatpush1.msra.mxu0 0.0
      %642 = vmatprep.subr.mxu0 0.0
      %643 = vmatpush1.msra.mxu0 0.0
      %644 = vmatprep.subr.mxu0 0.0
      %645 = vmatpush1.msra.mxu0 0.0
      %646 = vmatprep.subr.mxu0 0.0
      %647 = vmatpush1.msra.mxu0 0.0
      %648 = vmatprep.subr.mxu0 0.0
      %649 = vmatpush1.msra.mxu0 0.0
      %650 = vmatprep.mubr.f32.mxu0 0.0
      %651 = vmatmul.mubr.f32.gmra.mrb[0].mxu0 %v584
      %v652 = vpop.f32.mrb[0].mxu0
      %v653 = vadd.f32 %v580, %v652
      %v654 = vpop.f32.mrb[0].mxu0
      %655 = vdwg.mxu0
      %v656 = vmax.f32 %v653, 0.0
      %v657 = vsel %vm582, %v656, 0.0
      %v658 = vrot.slane %v657, 4
      %v659 = vadd.f32 %v657, %v658
      %v660 = vrot.slane %v659, 2
      %v661 = vadd.f32 %v659, %v660
      %v662 = vrot.slane %v661, 1
      %v663 = vadd.f32 %v661, %v662
      %v664 = vrcp.pop 8.0
      %v665 = vmul.f32 %v663, %v664
      %v666 = vld [vmem:[%s6] sm:$0xff]
      %v667 = vld [vmem:[%s6 + $0x8] sm:$0xff]
      %v668 = vld [vmem:[%s6 + $0x10] sm:$0xff]
      %v669 = vld [vmem:[%s6 + $0x18] sm:$0xff]
      %v670 = vld [vmem:[%s7] sm:$0x1]
      %v672 = vsel %vm582, %v665, 0
      %674 = vmatprep.subr.mxu0 0.0
      %675 = vmatpush1.msra.mxu0 %v666
      %676 = vmatprep.subr.mxu0 0.0
      %677 = vmatpush1.msra.mxu0 %v667
      %678 = vmatprep.subr.mxu0 0.0
      %679 = vmatpush1.msra.mxu0 %v668
      %680 = vmatprep.subr.mxu0 0.0
      %681 = vmatpush1.msra.mxu0 %v669
      %682 = vmatprep.subr.mxu0 0.0
      %683 = vmatpush1.msra.mxu0 0.0
      %684 = vmatprep.subr.mxu0 0.0
      %685 = vmatpush1.msra.mxu0 0.0
      %686 = vmatprep.subr.mxu0 0.0
      %687 = vmatpush1.msra.mxu0 0.0
      %688 = vmatprep.subr.mxu0 0.0
      %689 = vmatpush1.msra.mxu0 0.0
      %690 = vmatprep.subr.mxu0 0.0
      %691 = vmatpush1.msra.mxu0 0.0
      %692 = vmatprep.subr.mxu0 0.0
      %693 = vmatpush1.msra.mxu0 0.0
      %694 = vmatprep.subr.mxu0 0.0
      %695 = vmatpush1.msra.mxu0 0.0
      %696 = vmatprep.subr.mxu0 0.0
      %697 = vmatpush1.msra.mxu0 0.0
      %698 = vmatprep.subr.mxu0 0.0
      %699 = vmatpush1.msra.mxu0 0.0
      %700 = vmatprep.subr.mxu0 0.0
      %701 = vmatpush1.msra.mxu0 0.0
      %702 = vmatprep.subr.mxu0 0.0
      %703 = vmatpush1.msra.mxu0 0.0
      %704 = vmatprep.subr.mxu0 0.0
      %705 = vmatpush1.msra.mxu0 0.0
      %706 = vmatprep.subr.mxu0 0.0
      %707 = vmatpush1.msra.mxu0 0.0
      %708 = vmatprep.subr.mxu0 0.0
      %709 = vmatpush1.msra.mxu0 0.0
      %710 = vmatprep.subr.mxu0 0.0
      %711 = vmatpush1.msra.mxu0 0.0
      %712 = vmatprep.subr.mxu0 0.0
      %713 = vmatpush1.msra.mxu0 0.0
      %714 = vmatprep.subr.mxu0 0.0
      %715 = vmatpush1.msra.mxu0 0.0
      %716 = vmatprep.subr.mxu0 0.0
      %717 = vmatpush1.msra.mxu0 0.0
      %718 = vmatprep.subr.mxu0 0.0
      %719 = vmatpush1.msra.mxu0 0.0
      %720 = vmatprep.subr.mxu0 0.0
      %721 = vmatpush1.msra.mxu0 0.0
      %722 = vmatprep.subr.mxu0 0.0
      %723 = vmatpush1.msra.mxu0 0.0
      %724 = vmatprep.subr.mxu0 0.0
      %725 = vmatpush1.msra.mxu0 0.0
      %726 = vmatprep.subr.mxu0 0.0
      %727 = vmatpush1.msra.mxu0 0.0
      %728 = vmatprep.subr.mxu0 0.0
      %729 = vmatpush1.msra.mxu0 0.0
      %730 = vmatprep.subr.mxu0 0.0
      %731 = vmatpush1.msra.mxu0 0.0
      %732 = vmatprep.subr.mxu0 0.0
      %733 = vmatpush1.msra.mxu0 0.0
      %734 = vmatprep.subr.mxu0 0.0
      %735 = vmatpush1.msra.mxu0 0.0
      %736 = vmatprep.subr.mxu0 0.0
      %737 = vmatpush1.msra.mxu0 0.0
      %738 = vmatprep.mubr.f32.mxu0 0.0
      %739 = vmatmul.mubr.f32.gmra.mrb[0].mxu0 %v672
      %v740 = vpop.f32.mrb[0].mxu0
      %v741 = vadd.f32 %v670, %v740
      %v742 = vpop.f32.mrb[0].mxu0
      %743 = vdwg.mxu0
      %v744 = vmax.f32 %v741, 0.0
      %v745 = vld [vmem:[%s8] sm:$0xff]
      %v746 = vld [vmem:[%s8 + $0x8] sm:$0xff]
      %v747 = vld [vmem:[%s8 + $0x10] sm:$0xff]
      %v748 = vld [vmem:[%s8 + $0x18] sm:$0xff]
      %v749 = vld [vmem:[%s9] sm:$0x1]
      %v751 = vsel %vm582, %v744, 0
      %753 = vmatprep.subr.mxu0 0.0
      %754 = vmatpush1.msra.mxu0 %v745
      %755 = vmatprep.subr.mxu0 0.0
      %756 = vmatpush1.msra.mxu0 %v746
      %757 = vmatprep.subr.mxu0 0.0
      %758 = vmatpush1.msra.mxu0 %v747
      %759 = vmatprep.subr.mxu0 0.0
      %760 = vmatpush1.msra.mxu0 %v748
      %761 = vmatprep.subr.mxu0 0.0
      %762 = vmatpush1.msra.mxu0 0.0
      %763 = vmatprep.subr.mxu0 0.0
      %764 = vmatpush1.msra.mxu0 0.0
      %765 = vmatprep.subr.mxu0 0.0
      %766 = vmatpush1.msra.mxu0 0.0
      %767 = vmatprep.subr.mxu0 0.0
      %768 = vmatpush1.msra.mxu0 0.0
      %769 = vmatprep.subr.mxu0 0.0
      %770 = vmatpush1.msra.mxu0 0.0
      %771 = vmatprep.subr.mxu0 0.0
      %772 = vmatpush1.msra.mxu0 0.0
      %773 = vmatprep.subr.mxu0 0.0
      %774 = vmatpush1.msra.mxu0 0.0
      %775 = vmatprep.subr.mxu0 0.0
      %776 = vmatpush1.msra.mxu0 0.0
      %777 = vmatprep.subr.mxu0 0.0
      %778 = vmatpush1.msra.mxu0 0.0
      %779 = vmatprep.subr.mxu0 0.0
      %780 = vmatpush1.msra.mxu0 0.0
      %781 = vmatprep.subr.mxu0 0.0
      %782 = vmatpush1.msra.mxu0 0.0
      %783 = vmatprep.subr.mxu0 0.0
      %784 = vmatpush1.msra.mxu0 0.0
      %785 = vmatprep.subr.mxu0 0.0
      %786 = vmatpush1.msra.mxu0 0.0
      %787 = vmatprep.subr.mxu0 0.0
      %788 = vmatpush1.msra.mxu0 0.0
      %789 = vmatprep.subr.mxu0 0.0
      %790 = vmatpush1.msra.mxu0 0.0
      %791 = vmatprep.subr.mxu0 0.0
      %792 = vmatpush1.msra.mxu0 0.0
      %793 = vmatprep.subr.mxu0 0.0
      %794 = vmatpush1.msra.mxu0 0.0
      %795 = vmatprep.subr.mxu0 0.0
      %796 = vmatpush1.msra.mxu0 0.0
      %797 = vmatprep.subr.mxu0 0.0
      %798 = vmatpush1.msra.mxu0 0.0
      %799 = vmatprep.subr.mxu0 0.0
      %800 = vmatpush1.msra.mxu0 0.0
      %801 = vmatprep.subr.mxu0 0.0
      %802 = vmatpush1.msra.mxu0 0.0
      %803 = vmatprep.subr.mxu0 0.0
      %804 = vmatpush1.msra.mxu0 0.0
      %805 = vmatprep.subr.mxu0 0.0
      %806 = vmatpush1.msra.mxu0 0.0
      %807 = vmatprep.subr.mxu0 0.0
      %808 = vmatpush1.msra.mxu0 0.0
      %809 = vmatprep.subr.mxu0 0.0
      %810 = vmatpush1.msra.mxu0 0.0
      %811 = vmatprep.subr.mxu0 0.0
      %812 = vmatpush1.msra.mxu0 0.0
      %813 = vmatprep.subr.mxu0 0.0
      %814 = vmatpush1.msra.mxu0 0.0
      %815 = vmatprep.subr.mxu0 0.0
      %816 = vmatpush1.msra.mxu0 0.0
      %817 = vmatprep.mubr.f32.mxu0 0.0
      %818 = vmatmul.mubr.f32.gmra.mrb[0].mxu0 %v751
      %v819 = vpop.f32.mrb[0].mxu0
      %v820 = vadd.f32 %v749, %v819
      %v821 = vpop.f32.mrb[0].mxu0
      %822 = vdwg.mxu0
      %v823 = vlaneseq
      %v824 = vshrl.u32 %v823, 7
      %v825 = vsub.s32 0, %v824
      %v826 = vrot.slane %v820, %v825
      %v827 = vadd.f32 %v656, %v826
      %v828 = vld [vmem:[%s10] sm:$0xff]
      %v829 = vld [vmem:[%s10 + $0x8] sm:$0xff]
      %v830 = vld [vmem:[%s10 + $0x10] sm:$0xff]
      %v831 = vld [vmem:[%s10 + $0x18] sm:$0xff]
      %v832 = vld [vmem:[%s11] sm:$0x1]
      %v834 = vlaneseq
      %v835 = vshrl.u32 %v834, 7
      %v836 = vsub.s32 0, %v835
      %v837 = vrot.slane %v832, %v836
      %v840 = vsel %vm582, %v827, 0
      %842 = vmatprep.subr.mxu0 0.0
      %843 = vmatpush1.msra.mxu0 %v828
      %844 = vmatprep.subr.mxu0 0.0
      %845 = vmatpush1.msra.mxu0 %v829
      %846 = vmatprep.subr.mxu0 0.0
      %847 = vmatpush1.msra.mxu0 %v830
      %848 = vmatprep.subr.mxu0 0.0
      %849 = vmatpush1.msra.mxu0 %v831
      %850 = vmatprep.subr.mxu0 0.0
      %851 = vmatpush1.msra.mxu0 0.0
      %852 = vmatprep.subr.mxu0 0.0
      %853 = vmatpush1.msra.mxu0 0.0
      %854 = vmatprep.subr.mxu0 0.0
      %855 = vmatpush1.msra.mxu0 0.0
      %856 = vmatprep.subr.mxu0 0.0
      %857 = vmatpush1.msra.mxu0 0.0
      %858 = vmatprep.subr.mxu0 0.0
      %859 = vmatpush1.msra.mxu0 0.0
      %860 = vmatprep.subr.mxu0 0.0
      %861 = vmatpush1.msra.mxu0 0.0
      %862 = vmatprep.subr.mxu0 0.0
      %863 = vmatpush1.msra.mxu0 0.0
      %864 = vmatprep.subr.mxu0 0.0
      %865 = vmatpush1.msra.mxu0 0.0
      %866 = vmatprep.subr.mxu0 0.0
      %867 = vmatpush1.msra.mxu0 0.0
      %868 = vmatprep.subr.mxu0 0.0
      %869 = vmatpush1.msra.mxu0 0.0
      %870 = vmatprep.subr.mxu0 0.0
      %871 = vmatpush1.msra.mxu0 0.0
      %872 = vmatprep.subr.mxu0 0.0
      %873 = vmatpush1.msra.mxu0 0.0
      %874 = vmatprep.subr.mxu0 0.0
      %875 = vmatpush1.msra.mxu0 0.0
      %876 = vmatprep.subr.mxu0 0.0
      %877 = vmatpush1.msra.mxu0 0.0
      %878 = vmatprep.subr.mxu0 0.0
      %879 = vmatpush1.msra.mxu0 0.0
      %880 = vmatprep.subr.mxu0 0.0
      %881 = vmatpush1.msra.mxu0 0.0
      %882 = vmatprep.subr.mxu0 0.0
      %883 = vmatpush1.msra.mxu0 0.0
      %884 = vmatprep.subr.mxu0 0.0
      %885 = vmatpush1.msra.mxu0 0.0
      %886 = vmatprep.subr.mxu0 0.0
      %887 = vmatpush1.msra.mxu0 0.0
      %888 = vmatprep.subr.mxu0 0.0
      %889 = vmatpush1.msra.mxu0 0.0
      %890 = vmatprep.subr.mxu0 0.0
      %891 = vmatpush1.msra.mxu0 0.0
      %892 = vmatprep.subr.mxu0 0.0
      %893 = vmatpush1.msra.mxu0 0.0
      %894 = vmatprep.subr.mxu0 0.0
      %895 = vmatpush1.msra.mxu0 0.0
      %896 = vmatprep.subr.mxu0 0.0
      %897 = vmatpush1.msra.mxu0 0.0
      %898 = vmatprep.subr.mxu0 0.0
      %899 = vmatpush1.msra.mxu0 0.0
      %900 = vmatprep.subr.mxu0 0.0
      %901 = vmatpush1.msra.mxu0 0.0
      %902 = vmatprep.subr.mxu0 0.0
      %903 = vmatpush1.msra.mxu0 0.0
      %904 = vmatprep.subr.mxu0 0.0
      %905 = vmatpush1.msra.mxu0 0.0
      %906 = vmatprep.mubr.f32.mxu0 0.0
      %907 = vmatmul.mubr.f32.gmra.mrb[0].mxu0 %v840
      %v908 = vpop.f32.mrb[0].mxu0
      %v909 = vadd.f32 %v837, %v908
      %v910 = vpop.f32.mrb[0].mxu0
      %911 = vdwg.mxu0
      %v912 = vmax.f32 %v909, 0.0
      %v913 = vld [vmem:[%s12] sm:$0xff]
      %v914 = vld [vmem:[%s12 + $0x8] sm:$0xff]
      %v915 = vld [vmem:[%s12 + $0x10] sm:$0xff]
      %v916 = vld [vmem:[%s12 + $0x18] sm:$0xff]
      %v917 = vld [vmem:[%s12 + $0x20] sm:$0xff]
      %v918 = vld [vmem:[%s12 + $0x28] sm:$0xff]
      %v919 = vld [vmem:[%s12 + $0x30] sm:$0xff]
      %v920 = vld [vmem:[%s12 + $0x38] sm:$0xff]
      %v921 = vld [vmem:[%s13] sm:$0x1]
      %v923 = vlaneseq
      %v924 = vshrl.u32 %v923, 7
      %v925 = vsub.s32 0, %v924
      %v926 = vrot.slane %v921, %v925
      %v929 = vsel %vm496, %v912, 0
      %931 = vmatprep.subr.mxu0 0.0
      %932 = vmatpush1.msra.mxu0 %v913
      %933 = vmatprep.subr.mxu0 0.0
      %934 = vmatpush1.msra.mxu0 %v914
      %935 = vmatprep.subr.mxu0 0.0
      %936 = vmatpush1.msra.mxu0 %v915
      %937 = vmatprep.subr.mxu0 0.0
      %938 = vmatpush1.msra.mxu0 %v916
      %939 = vmatprep.subr.mxu0 0.0
      %940 = vmatpush1.msra.mxu0 %v917
      %941 = vmatprep.subr.mxu0 0.0
      %942 = vmatpush1.msra.mxu0 %v918
      %943 = vmatprep.subr.mxu0 0.0
      %944 = vmatpush1.msra.mxu0 %v919
      %945 = vmatprep.subr.mxu0 0.0
      %946 = vmatpush1.msra.mxu0 %v920
      %947 = vmatprep.subr.mxu0 0.0
      %948 = vmatpush1.msra.mxu0 0.0
      %949 = vmatprep.subr.mxu0 0.0
      %950 = vmatpush1.msra.mxu0 0.0
      %951 = vmatprep.subr.mxu0 0.0
      %952 = vmatpush1.msra.mxu0 0.0
      %953 = vmatprep.subr.mxu0 0.0
      %954 = vmatpush1.msra.mxu0 0.0
      %955 = vmatprep.subr.mxu0 0.0
      %956 = vmatpush1.msra.mxu0 0.0
      %957 = vmatprep.subr.mxu0 0.0
      %958 = vmatpush1.msra.mxu0 0.0
      %959 = vmatprep.subr.mxu0 0.0
      %960 = vmatpush1.msra.mxu0 0.0
      %961 = vmatprep.subr.mxu0 0.0
      %962 = vmatpush1.msra.mxu0 0.0
      %963 = vmatprep.subr.mxu0 0.0
      %964 = vmatpush1.msra.mxu0 0.0
      %965 = vmatprep.subr.mxu0 0.0
      %966 = vmatpush1.msra.mxu0 0.0
      %967 = vmatprep.subr.mxu0 0.0
      %968 = vmatpush1.msra.mxu0 0.0
      %969 = vmatprep.subr.mxu0 0.0
      %970 = vmatpush1.msra.mxu0 0.0
      %971 = vmatprep.subr.mxu0 0.0
      %972 = vmatpush1.msra.mxu0 0.0
      %973 = vmatprep.subr.mxu0 0.0
      %974 = vmatpush1.msra.mxu0 0.0
      %975 = vmatprep.subr.mxu0 0.0
      %976 = vmatpush1.msra.mxu0 0.0
      %977 = vmatprep.subr.mxu0 0.0
      %978 = vmatpush1.msra.mxu0 0.0
      %979 = vmatprep.subr.mxu0 0.0
      %980 = vmatpush1.msra.mxu0 0.0
      %981 = vmatprep.subr.mxu0 0.0
      %982 = vmatpush1.msra.mxu0 0.0
      %983 = vmatprep.subr.mxu0 0.0
      %984 = vmatpush1.msra.mxu0 0.0
      %985 = vmatprep.subr.mxu0 0.0
      %986 = vmatpush1.msra.mxu0 0.0
      %987 = vmatprep.subr.mxu0 0.0
      %988 = vmatpush1.msra.mxu0 0.0
      %989 = vmatprep.subr.mxu0 0.0
      %990 = vmatpush1.msra.mxu0 0.0
      %991 = vmatprep.subr.mxu0 0.0
      %992 = vmatpush1.msra.mxu0 0.0
      %993 = vmatprep.subr.mxu0 0.0
      %994 = vmatpush1.msra.mxu0 0.0
      %995 = vmatprep.mubr.f32.mxu0 0.0
      %996 = vmatmul.mubr.f32.gmra.mrb[0].mxu0 %v929
      %v997 = vpop.f32.mrb[0].mxu0
      %v998 = vadd.f32 %v926, %v997
      %v999 = vpop.f32.mrb[0].mxu0
      %1000 = vdwg.mxu0
      %1002 = vrot.lane.b32.xlu0 %v998, 1
      %v1003 = vpop.permute.xlu0 %1002
      %v1005 = vsub.f32 %v998, %v1003
      %v1006 = vsub.f32 0.0, %v1005
      %v1007 = vmax.f32 %v1006, 0.0
      %v1008 = vand.u32 2147483647, %v1006
      %v1009 = vsub.f32 0.0, %v1008
      %v1010 = vmul.f32 %v1009, 1.442695
      %v1011 = vpow.pop %v1010
      %v1012 = vadd.f32 %v1011, 1.0
      %v1013 = vlog2.pop %v1012
      %v1014 = vmul.f32 %v1013, 0.6931472
      %v1015 = vadd.f32 %v1007, %v1014
      %v1016 = vsub.f32 0.0, %v1015
      %v1017 = vmax.f32 %v1005, 0.0
      %v1018 = vand.u32 2147483647, %v1005
      %v1019 = vsub.f32 0.0, %v1018
      %v1020 = vmul.f32 %v1019, 1.442695
      %v1021 = vpow.pop %v1020
      %v1022 = vadd.f32 %v1021, 1.0
      %v1023 = vlog2.pop %v1022
      %v1024 = vmul.f32 %v1023, 0.6931472
      %v1025 = vadd.f32 %v1017, %v1024
      %v1026 = vsub.f32 0.0, %v1025
      %v1027 = vmul.f32 %v1016, 1.442695
      %v1028 = vpow.pop %v1027
      %v1029 = vsub.f32 1.0, %v1028
      %v1030 = vld [vmem:[%s475] sm:$0xff]
      %1032 = vrot.lane.b32.xlu0 %v1028, 127
      %v1033 = vpop.permute.xlu0 %1032
      %vm1035 = vcmp.lt.f32.partialorder %v1030, %v1033
      %v1036 = vsel %vm1035, 1, 0
      %v1037 = vcvt.s32.f32 %v1036
      %vm1038 = vcmp.gt.f32.partialorder %v1037, 0.5
      %1040 = vrot.lane.b32.xlu0 %v1016, 127
      %v1041 = vpop.permute.xlu0 %1040
      %1044 = vrot.lane.b32.xlu0 %v1026, 127
      %v1045 = vpop.permute.xlu0 %1044
      %v1047 = vsel %vm1038, %v1041, %v1045
      %v1048 = vmul.f32 %v1029, %v1026
      %v1049 = vmul.f32 %v1028, %v1016
      %v1050 = vadd.f32 %v1048, %v1049
      %v1051 = vsub.f32 0.0, %v1050
      %1053 = vrot.lane.b32.xlu0 %v1029, 127
      %v1054 = vpop.permute.xlu0 %1053
      %1057 = vrot.lane.b32.xlu0 %v1037, 2
      %v1058 = vpop.permute.xlu0 %1057
      %1061 = vrot.lane.b32.xlu0 %v1047, 3
      %v1062 = vpop.permute.xlu0 %1061
      %1065 = vrot.lane.b32.xlu0 %v1051, 3
      %v1066 = vpop.permute.xlu0 %1065
      %1068 = vrot.lane.b32.xlu0 %v998, 3
      %v1069 = vpop.permute.xlu0 %1068
      %vm1071 = vcmask 7168
      %v1072 = vsel %vm1071, %v1054, %v1028
      %vm1073 = vcmask 15360
      %v1074 = vsel %vm1073, %v1072, %v1058
      %vm1075 = vcmask 23552
      %v1076 = vsel %vm1075, %v1074, %v1062
      %vm1077 = vcmask 31744
      %v1078 = vsel %vm1077, %v1076, %v1066
      %vm1079 = vcmask 39936
      %v1080 = vsel %vm1079, %v1078, %v1069
      %vm1081 = vcmask 48128
      %v1082 = vsel %vm1081, %v1080, 0.0
      %vm1083 = vcmask 56320
      %v1084 = vsel %vm1083, %v1082, 0.0
      %vm1085 = vcmask 64512
      %1086 = vst.msk [vmem:[%s479] sm:$0xff] %vm1085, %v1084
      %p1087 = scmp.lt.s32.totalorder %s25, 1
      %s1088 = scalar_select %p1087, %s25, 1
      %s1089 = smul.addr %s1088, 8
      %s1090 = scalar_lea.vmem %s14, %s1089
      // Predicated region
      $region77: #{decision_forward.1} parent=75 // pred_check
        %p1091 = pneg %p347
      $region78: #{decision_forward.1} parent=75 // pred_check_branch
        %1093 = sbr.rel (%p1091) target = $region80
      $region79: #{decision_forward.1} parent=75 // pred_region
        _
      $region80: #{decision_forward.1} parent=75 // pred_fallthru
        _
    $region76: #{decision_forward.1} parent=5 // pred_fallthru
      _
    %p1094 = scmp.le.s32.totalorder 2, %s20
    // Predicated region
    $region81: #{decision_forward.1} parent=5 // pred_check
      %p1095 = pneg %p1094
    $region82: #{decision_forward.1} parent=5 // pred_check_branch
      %1097 = sbr.rel (%p1095) target = $region84
    $region83: #{decision_forward.1} parent=5 // pred_region
      %s1098 = ssub.s32 %s20, 2
      // Predicated region
      $region85: #{decision_forward.1} parent=83 // pred_check
        %p1099 = pneg %p353
      $region86: #{decision_forward.1} parent=83 // pred_check_branch
        %1101 = sbr.rel (%p1099) target = $region88
      $region87: #{decision_forward.1} parent=83 // pred_region
        %p1102 = scmp.lt.s32.totalorder %s26, 1
        %s1103 = scalar_select %p1102, %s26, 1
        %s1104 = smul.addr %s1103, 8
        %s1105 = scalar_lea.vmem %s14, %s1104
      $region88: #{decision_forward.1} parent=83 // pred_fallthru
        _
    $region84: #{decision_forward.1} parent=5 // pred_fallthru
      _
  $region6: #{decision_forward.1} parent=0 // loop_footer
    %s24 = sadd.s32 1, %s20
  $region7: #{decision_forward.1} parent=0 // loop_footer_branch
    %19 = sbr.rel target = $region3
  $region8: #{decision_forward.1} parent=0 // loop_exit
    _

</llo_original>
